<compile_context>
chip_gen: v5e
topology: v5e:2x2
jax: 0.10.0
libtpu: 0.0.40
codegen_flags: <defaults>
</compile_context>

<pallas_src>
import warnings

import jax
import jax.numpy as jnp
from jax.experimental import pallas as pl
from jax.experimental.pallas import tpu as pltpu


def _round_up(x: int, m: int) -> int:
    return ((x + m - 1) // m) * m


def _cdiv(a: int, b: int) -> int:
    return -(-a // b)


def _make_kernel(scale: float):
    # NOTE: `scale` (= alpha / rank) is a static module hyperparameter baked
    # into the closure (it is a static jit arg in the wrapper).  If it ever
    # needs to vary at runtime without recompiling, pass it as a (1, 1) SMEM
    # scalar instead.
    def kernel(w_ref, b_ref, a_ref, o_ref):
        # Rank-r matmul on the MXU with f32 accumulation, then fused
        # scale + add on the VPU; single cast at the (edge-masked) store.
        delta = jnp.dot(b_ref[...], a_ref[...],
                        preferred_element_type=jnp.float32)
        o_ref[...] = (w_ref[...] + delta * scale).astype(o_ref.dtype)

    return kernel


def _select_tiles(fin: int, fout: int, itemsize: int, *, max_tn: int,
                  tile_bytes: int):
    """Pick (tm, tn).

    tn: lane-dense (multiple of 128), capped at max_tn -- it does NOT need to
        divide fout; cdiv + masked edge blocks handle the remainder.
    tm: derived from a per-W-tile VMEM byte budget (multiple of the sublane
        unit), capped so it never exceeds the (rounded-up) row count.
    """
    sub = {4: 8, 2: 16, 1: 32}.get(itemsize, 8)   # sublane unit per dtype
    lane = 128

    tn = max(lane, min(_round_up(max_tn, lane), _round_up(fout, lane)))
    tm = max(sub, (tile_bytes // (tn * itemsize)) // sub * sub)
    tm = min(tm, _round_up(fin, sub), 1024)

    # v7x megacore balance: with both grid axes "parallel", avoid an odd step
    # count (> 1) that would leave one of the 2 TensorCores under-used.
    # No-op on v5e/v6e (single TensorCore); correctness never depends on it.
    ni, nj = _cdiv(fin, tm), _cdiv(fout, tn)
    if ni % 2 == 1 and ni > 1:
        tm = max(sub, _round_up(_cdiv(fin, ni + 1), sub))
    elif ni == 1 and nj % 2 == 1 and nj > 1:
        tn = max(lane, _round_up(_cdiv(fout, nj + 1), lane))
    return tm, tn


def _lora_forward(original_weights, lora_A, lora_B, *, scale, enable=True,
                  max_tn=2048, tile_bytes=4 * 1024 * 1024):
    """Pallas implementation of LoRAParameterization.forward."""
    if not enable:
        return original_weights

    rank, features_out = lora_A.shape
    features_in, rank_b = lora_B.shape
    assert rank == rank_b
    assert original_weights.size == features_in * features_out

    dtype = original_weights.dtype
    itemsize = dtype.itemsize

    tm, tn = _select_tiles(features_in, features_out, itemsize,
                           max_tn=max_tn, tile_bytes=tile_bytes)
    ni = _cdiv(features_in, tm)
    nj = _cdiv(features_out, tn)

    # torch .view(original_weights.shape) == row-major reshape of (B @ A).
    # Both reshapes below are bitcasts; W is NEVER padded or sliced.
    w_flat = original_weights.reshape(features_in, features_out)

    # lora_A / lora_B are tiny (rank * dim): zero-pad them to full tile
    # multiples so every matmul operand is well-defined (the garbage region of
    # partial W edge blocks is discarded by the masked stores), and cast them
    # to the weight dtype so the rank-r matmul stays on the fast MXU path.
    b_mat = lora_B.astype(dtype)
    a_mat = lora_A.astype(dtype)
    pad_b = ni * tm - features_in
    pad_a = nj * tn - features_out
    if pad_b:
        b_mat = jnp.pad(b_mat, ((0, pad_b), (0, 0)))
    if pad_a:
        a_mat = jnp.pad(a_mat, ((0, 0), (0, pad_a)))

    w_bytes = features_in * features_out * itemsize
    cost = pl.CostEstimate(
        flops=2 * features_in * rank * features_out,
        transcendentals=0,
        bytes_accessed=(2 * w_bytes
                        + b_mat.size * itemsize + a_mat.size * itemsize),
    )

    # Double-buffered footprint: (W-in + out) tiles x2 + tiny A/B tiles x2.
    # Set the scoped-VMEM limit explicitly (v5e's default is only 16 MiB);
    # cap at 64 MiB so it is always within v7x's physical VMEM.
    vmem_bytes = (4 * tm * tn + 2 * tm * rank + 2 * rank * tn) * itemsize
    vmem_limit = int(min(max(32 << 20, vmem_bytes + (8 << 20)), 64 << 20))

    out_flat = pl.pallas_call(
        _make_kernel(float(scale)),
        out_shape=jax.ShapeDtypeStruct((features_in, features_out), dtype),
        grid_spec=pltpu.PrefetchScalarGridSpec(
            num_scalar_prefetch=0,
            grid=(ni, nj),
            in_specs=[
                pl.BlockSpec((tm, tn), lambda i, j: (i, j)),      # W tile
                pl.BlockSpec((tm, rank), lambda i, j: (i, 0)),    # lora_B rows
                pl.BlockSpec((rank, tn), lambda i, j: (0, j)),    # lora_A cols
            ],
            out_specs=pl.BlockSpec((tm, tn), lambda i, j: (i, j)),
        ),
        compiler_params=pltpu.CompilerParams(
            dimension_semantics=("parallel", "parallel"),
            vmem_limit_bytes=vmem_limit),
        input_output_aliases={0: 0},   # output reuses W's (donated) buffer
        cost_estimate=cost,
    )(w_flat, b_mat, a_mat)

    return out_flat.reshape(original_weights.shape)


# Public entry point: jit with the weight donated so input_output_aliases can
# actually bite -- HBM traffic is then exactly one read + one write of W.
lora_forward = jax.jit(
    _lora_forward,
    static_argnames=("scale", "enable", "max_tn", "tile_bytes"),
    donate_argnums=(0,),
)


if __name__ == "__main__":
    # Donation failures are only a perf issue; keep the output clean.
    warnings.filterwarnings("ignore", message=".*donated.*")

    key = jax.random.PRNGKey(0)
    (k_w, k_a, k_b, k_w2, k_a2, k_b2, k_w3, k_a3, k_b3) = jax.random.split(key, 9)

    # --- Test 1: module init (lora_B == 0), nn.Linear-style W layout --------
    features_in, features_out, rank, alpha = 16, 32, 4, 4
    scale = alpha / rank
    W = jax.random.normal(k_w, (features_out, features_in), dtype=jnp.float32)
    lora_A = jax.random.normal(k_a, (rank, features_out), dtype=jnp.float32)
    lora_B0 = jnp.zeros((features_in, rank), dtype=jnp.float32)

    ref1 = W + (lora_B0 @ lora_A).reshape(W.shape) * scale
    out1 = jax.block_until_ready(
        lora_forward(jnp.copy(W), lora_A, lora_B0, scale=scale))
    assert jnp.allclose(out1, ref1, atol=1e-5), "mismatch (zero B)"

    # --- Test 2: nonzero lora_B (post-training) ------------------------------
    lora_Bt = jax.random.normal(k_b, (features_in, rank), dtype=jnp.float32)
    ref2 = W + (lora_Bt @ lora_A).reshape(W.shape) * scale
    out2 = jax.block_until_ready(
        lora_forward(jnp.copy(W), lora_A, lora_Bt, scale=scale))
    assert jnp.allclose(out2, ref2, atol=1e-4), "mismatch (trained B)"

    # --- Test 3: multi-tile grid + masked ragged edge (no wrapper padding) ---
    fi3, fo3, rank3, alpha3 = 32, 200, 2, 8
    scale3 = alpha3 / rank3
    w3 = jax.random.normal(k_w2, (fi3, fo3), dtype=jnp.float32)
    a3 = jax.random.normal(k_a2, (rank3, fo3), dtype=jnp.float32)
    b3 = jax.random.normal(k_b2, (fi3, rank3), dtype=jnp.float32)
    ref3 = w3 + (b3 @ a3).reshape(w3.shape) * scale3
    out3 = jax.block_until_ready(
        lora_forward(jnp.copy(w3), a3, b3, scale=scale3,
                     max_tn=128, tile_bytes=4096))
    assert jnp.allclose(out3, ref3, atol=1e-4), "mismatch (tiled/masked edge)"

    # --- Test 4: awkward fout (17*128) with default tiles --------------------
    fi4, fo4, rank4, alpha4 = 256, 2176, 8, 16
    scale4 = alpha4 / rank4
    w4 = jax.random.normal(k_w3, (fi4, fo4), dtype=jnp.float32)
    a4 = jax.random.normal(k_a3, (rank4, fo4), dtype=jnp.float32)
    b4 = jax.random.normal(k_b3, (fi4, rank4), dtype=jnp.float32)
    ref4 = w4 + (b4 @ a4).reshape(w4.shape) * scale4
    out4 = jax.block_until_ready(
        lora_forward(jnp.copy(w4), a4, b4, scale=scale4))
    assert jnp.allclose(out4, ref4, atol=1e-4), "mismatch (awkward fout)"

    # --- Test 5: enable=False passthrough ------------------------------------
    out5 = jax.block_until_ready(
        lora_forward(jnp.copy(W), lora_A, lora_Bt, scale=scale, enable=False))
    assert jnp.allclose(out5, W), "mismatch (disabled)"

    print("KERNEL_OK")
</pallas_src>

<mosaic_0001>
module attributes {stable_mosaic.version = 11 : i64} {
  func.func @kernel(%arg0: i32, %arg1: i32, %arg2: memref<16x128xf32, #tpu.memory_space<vmem>>, %arg3: memref<16x4xf32, #tpu.memory_space<vmem>>, %arg4: memref<4x128xf32, #tpu.memory_space<vmem>>, %arg5: memref<16x128xf32, #tpu.memory_space<vmem>>) attributes {dimension_semantics = [#tpu.dimension_semantics<parallel>, #tpu.dimension_semantics<parallel>], iteration_bounds = array<i64: 1, 1>, scalar_prefetch = 0 : i64, scratch_operands = 0 : i64, tpu.core_type = #tpu.core_type<tc>, window_params = [{transform_indices = @transform_0, window_bounds = array<i64: 16, 128>}, {transform_indices = @transform_1, window_bounds = array<i64: 16, 4>}, {transform_indices = @transform_2, window_bounds = array<i64: 4, 128>}, {transform_indices = @transform_3, window_bounds = array<i64: 16, 128>}]} {
    %c0 = arith.constant 0 : index
    %c0_0 = arith.constant 0 : index
    %0 = vector.load %arg3[%c0, %c0_0] : memref<16x4xf32, #tpu.memory_space<vmem>>, vector<16x4xf32>
    %c0_1 = arith.constant 0 : index
    %c0_2 = arith.constant 0 : index
    %1 = vector.load %arg4[%c0_1, %c0_2] : memref<4x128xf32, #tpu.memory_space<vmem>>, vector<4x128xf32>
    %cst = arith.constant dense<0.000000e+00> : vector<16x128xf32>
    %2 = tpu.matmul %0, %1, %cst {dimension_numbers = #tpu.dot_dimension_numbers<[1], [0], [0], [1], [0, 0, 1, 1], [], []>} : vector<16x4xf32>, vector<4x128xf32>, vector<16x128xf32> -> vector<16x128xf32>
    %c0_3 = arith.constant 0 : index
    %c0_4 = arith.constant 0 : index
    %3 = vector.load %arg2[%c0_3, %c0_4] : memref<16x128xf32, #tpu.memory_space<vmem>>, vector<16x128xf32>
    %cst_5 = arith.constant 1.000000e+00 : f32
    %4 = vector.broadcast %cst_5 : f32 to vector<16x128xf32>
    %5 = arith.mulf %2, %4 : vector<16x128xf32>
    %6 = arith.addf %3, %5 : vector<16x128xf32>
    %c0_6 = arith.constant 0 : index
    %c0_7 = arith.constant 0 : index
    %7 = vector.load %arg5[%c0_6, %c0_7] : memref<16x128xf32, #tpu.memory_space<vmem>>, vector<16x128xf32>
    tpu.vector_store %arg5[%c0_6, %c0_7], %6 {strides = array<i32>} : memref<16x128xf32, #tpu.memory_space<vmem>>, vector<16x128xf32>,
    return
  }
  func.func @transform_0(%arg0: i32, %arg1: i32) -> (i32, i32) {
    %c0_i32 = arith.constant 0 : i32
    return %arg0, %arg1 : i32, i32
  }
  func.func @transform_1(%arg0: i32, %arg1: i32) -> (i32, i32) {
    %c0_i32 = arith.constant 0 : i32
    %c0_i32_0 = arith.constant 0 : i32
    return %arg0, %c0_i32 : i32, i32
  }
  func.func @transform_2(%arg0: i32, %arg1: i32) -> (i32, i32) {
    %c0_i32 = arith.constant 0 : i32
    %c0_i32_0 = arith.constant 0 : i32
    return %c0_i32, %arg1 : i32, i32
  }
  func.func @transform_3(%arg0: i32, %arg1: i32) -> (i32, i32) {
    %c0_i32 = arith.constant 0 : i32
    return %arg0, %arg1 : i32, i32
  }
}

</mosaic_0001>

<llo_original>
// kernel: _lora_forward.1
$region0: #{_lora_forward.1}
  #allocation0 [shape = 'u32[]', space=smem, size = 0x4, offset = 0x4, fixed_abs, tag = 'smem constant byte address 0x4 - core index']
  #allocation1 [shape = 'u32[72,128]{1,0:T(1,128)}', space=vmem, size = 0x9000, scoped, tag = 'internal scratch']
  %s0 = inlined_call_operand.vmem [shape: f32[16,32], index: 0, kind: input, shape index: {}, may-alias: {0,3}]
  %s1 = inlined_call_operand.vmem [shape: f32[16,4], index: 1, kind: input, shape index: {}]
  %s2 = inlined_call_operand.vmem [shape: f32[4,128], index: 2, kind: input, shape index: {}]
  %s3 = inlined_call_operand.vmem [shape: f32[16,32], index: 3, kind: output, shape index: {}, may-alias: {0,3}]
  %s4 = sld [smem:[#allocation0]]
  $region22: #{_lora_forward.1} parent=0
    _
  %s6 = ssub.s32 1, %s4
  %s7 = scalar_select 0, %s6, %s4
  // Predicated region
  $region2: #{_lora_forward.1} parent=0 // pred_check
    _
  $region3: #{_lora_forward.1} parent=0 // pred_check_branch
    %9 = sbr.rel (0) target = $region5
  $region4: #{_lora_forward.1} parent=0 // pred_region
    _
  $region5: #{_lora_forward.1} parent=0 // pred_fallthru
    _
  // Predicated region
  $region6: #{_lora_forward.1} parent=0 // pred_check
    _
  $region7: #{_lora_forward.1} parent=0 // pred_check_branch
    %11 = sbr.rel (0) target = $region9
  $region8: #{_lora_forward.1} parent=0 // pred_region
    _
  $region9: #{_lora_forward.1} parent=0 // pred_fallthru
    _
  // Predicated region
  $region10: #{_lora_forward.1} parent=0 // pred_check
    _
  $region11: #{_lora_forward.1} parent=0 // pred_check_branch
    %13 = sbr.rel (0) target = $region13
  $region12: #{_lora_forward.1} parent=0 // pred_region
    _
  $region13: #{_lora_forward.1} parent=0 // pred_fallthru
    _
  %v14 = vld [vmem:[%s1] sm:$0xff]
  %v15 = vld [vmem:[%s1 + $0x8] sm:$0xff]
  %v16 = vld [vmem:[%s2] sm:$0xf]
  %vm17 = vcmask 31744
  %v19 = vsel %vm17, %v14, 0
  %v22 = vsel %vm17, %v15, 0
  %vm24 = vcmask 1043456
  %v26 = vsel %vm24, %v16, 0
  %28 = vmatpush.msra.mxu0 0.0
  %29 = vmatpush.msra.mxu0 0.0
  %30 = vmatpush.msra.mxu0 0.0
  %31 = vmatpush.msra.mxu0 0.0
  %32 = vmatpush.msra.mxu0 0.0
  %33 = vmatpush.msra.mxu0 0.0
  %34 = vmatpush.msra.mxu0 0.0
  %35 = vmatpush.msra.mxu0 0.0
  %36 = vmatpush.msra.mxu0 0.0
  %37 = vmatpush.msra.mxu0 0.0
  %38 = vmatpush.msra.mxu0 0.0
  %39 = vmatpush.msra.mxu0 0.0
  %40 = vmatpush.msra.mxu0 0.0
  %41 = vmatpush.msra.mxu0 0.0
  %42 = vmatpush.msra.mxu0 0.0
  %43 = vmatpush.msra.mxu0 %v26
  %44 = vmatmul.f32.gmra.mxu0 %v19
  %v45 = vpop.f32.mrf.mxu0
  %v46 = vadd.f32 0.0, %v45
  %47 = vmatmul.f32.gmra.mxu0 %v22
  %v48 = vpop.f32.mrf.mxu0
  %v49 = vadd.f32 0.0, %v48
  %50 = vdwg.mxu0
  %v51 = vld [vmem:[%s0] sm:$0xff]
  %v52 = vld [vmem:[%s0 + $0x8] sm:$0xff]
  %v53 = vadd.f32 %v51, %v46
  %v54 = vadd.f32 %v52, %v49
  %55 = vst [vmem:[%s3] sm:$0xff] %v53
  %56 = vst [vmem:[%s3 + $0x8] sm:$0xff] %v54
  // Predicated region
  $region14: #{_lora_forward.1} parent=0 // pred_check
    _
  $region15: #{_lora_forward.1} parent=0 // pred_check_branch
    %58 = sbr.rel (0) target = $region17
  $region16: #{_lora_forward.1} parent=0 // pred_region
    _
  $region17: #{_lora_forward.1} parent=0 // pred_fallthru
    _
  // Predicated region
  $region18: #{_lora_forward.1} parent=0 // pred_check
    _
  $region19: #{_lora_forward.1} parent=0 // pred_check_branch
    %60 = sbr.rel (0) target = $region21
  $region20: #{_lora_forward.1} parent=0 // pred_region
    _
  $region21: #{_lora_forward.1} parent=0 // pred_fallthru
    _

</llo_original>
